<compile_context>
chip_gen: v5e
topology: v5e:2x2
jax: 0.10.0
libtpu: 0.0.40
codegen_flags: <defaults>
</compile_context>

<pallas_src>
import functools

import jax
import jax.numpy as jnp
from jax.experimental import pallas as pl
from jax.experimental.pallas import tpu as pltpu

INPUT_DIM = 3
HIDDEN_DIM = 50
NUM_LAYERS = 2
OUTPUT_DIM = 1

H_PAD = 64                      # sublane slot per gate / hidden width (50 -> 64)
NUM_GATES = 3                   # i, g, o  (f-gate dropped: it multiplies c_prev == 0)
GATE_ROWS = NUM_GATES * H_PAD   # 192
K0 = 8                          # x^T rows: 3 inputs + 1 ones-row (bias) + 4 zero pad


def _round_up(n, m):
    return ((n + m - 1) // m) * m


def _gate_epilogue(gates):
    """gates: (GATE_ROWS, tn) with 64-row [i, g, o] sublane slots -> h: (H_PAD, tn).

    Padded rows carry gates == 0, so h_pad = sigmoid(0) * tanh(sigmoid(0) * tanh(0)) == 0:
    the padding stays exactly zero and is safe to feed into the next matmul."""
    i = jax.nn.sigmoid(gates[0 * H_PAD:1 * H_PAD, :])
    g = jnp.tanh(gates[1 * H_PAD:2 * H_PAD, :])
    o = jax.nn.sigmoid(gates[2 * H_PAD:3 * H_PAD, :])
    c = i * g                       # + f * c_prev, which is identically zero here
    return o * jnp.tanh(c)


def lstm_fc_kernel(xt_ref, w0_ref, w1_ref, b1_ref, wfc_ref, bfc_ref, out_ref):
    # Layer 0: gates0^T = W0aug @ [x^T; 1; 0...] on the MXU; the layer-0 bias rides in
    # the ones-row column of w0, so there is no separate bias broadcast.
    gates0 = jnp.dot(w0_ref[...], xt_ref[...], preferred_element_type=jnp.float32)
    h1 = _gate_epilogue(gates0)     # (64, tn), rows 50..63 exactly 0

    # Layer 1: (192, 64) @ (64, tn) on the MXU against VMEM-resident weights.
    gates1 = jnp.dot(w1_ref[...], h1, preferred_element_type=jnp.float32) + b1_ref[...]
    h2 = _gate_epilogue(gates1)     # (64, tn)

    # FC head (H -> 1): lane-broadcast multiply + sublane (XLU) reduce -> lane-dense row.
    out = jnp.sum(h2 * wfc_ref[...], axis=0, keepdims=True) + bfc_ref[0, 0]
    out_ref[...] = out[None].astype(out_ref.dtype)      # (1, 1, tn)


@functools.partial(jax.jit, static_argnames=("block_n",))
def lstm_model_forward(x, params, *, block_n=2048):
    """x: (N, INPUT_DIM) float32 -> (N, OUTPUT_DIM) float32."""
    n = x.shape[0]
    n_aligned = _round_up(n, 128)          # batch lives on lanes: 128-lane granularity
    tn = min(block_n, n_aligned)
    if tn == n_aligned and tn >= 256:
        tn = _round_up(tn // 2, 128)       # >= 2 grid steps so both v7x TCs get work
    num_blocks = pl.cdiv(n_aligned, tn)
    n_pad = num_blocks * tn

    # Batch-on-lanes input: x^T plus a constant ones row that carries the layer-0 bias.
    xt = jnp.zeros((K0, n_pad), jnp.float32)
    xt = xt.at[:INPUT_DIM, :n].set(x.T)
    xt = xt.at[INPUT_DIM, :].set(1.0)

    const = lambda i: (0, 0)               # weights/biases stay VMEM-resident
    grid_spec = pltpu.PrefetchScalarGridSpec(
        num_scalar_prefetch=0,
        grid=(num_blocks,),
        in_specs=[
            pl.BlockSpec((K0, tn), lambda i: (0, i)),               # x^T tile (dense)
            pl.BlockSpec((GATE_ROWS, K0), const),                   # w0 (+ bias column)
            pl.BlockSpec((GATE_ROWS, H_PAD), const),                # w1
            pl.BlockSpec((GATE_ROWS, 1), const),                    # b1
            pl.BlockSpec((H_PAD, 1), const),                        # w_fc
            pl.BlockSpec(memory_space=pltpu.MemorySpace.SMEM),      # b_fc scalar
        ],
        out_specs=pl.BlockSpec((1, 1, tn), lambda i: (i, 0, 0)),    # lane-dense row
    )
    out = pl.pallas_call(
        lstm_fc_kernel,
        out_shape=jax.ShapeDtypeStruct((num_blocks, 1, tn), jnp.float32),
        grid_spec=grid_spec,
        compiler_params=pltpu.CompilerParams(
            dimension_semantics=("parallel",),       # megacore: shard batch tiles
            vmem_limit_bytes=32 * 1024 * 1024,       # comfortable on v5e/v6e/v7x
        ),
    )(
        xt,
        params["w0"], params["w1"], params["b1"],
        params["w_fc"], params["b_fc"],
    )
    return out.reshape(-1)[:n].reshape(n, OUTPUT_DIM)


# ----------------------------------------------------------------------------------
# Parameter handling: raw PyTorch-shaped params -> packed, batch-on-lanes kernel params.
# ----------------------------------------------------------------------------------

def init_raw_params(key):
    """nn.LSTM / nn.Linear shaped params, uniform(-1/sqrt(H), 1/sqrt(H))."""
    ks = jax.random.split(key, 10)
    bound = 1.0 / jnp.sqrt(jnp.float32(HIDDEN_DIM))

    def u(k, shape):
        return jax.random.uniform(k, shape, jnp.float32, -bound, bound)

    return {
        "w_ih0": u(ks[0], (4 * HIDDEN_DIM, INPUT_DIM)),
        "w_hh0": u(ks[1], (4 * HIDDEN_DIM, HIDDEN_DIM)),
        "b_ih0": u(ks[2], (4 * HIDDEN_DIM,)),
        "b_hh0": u(ks[3], (4 * HIDDEN_DIM,)),
        "w_ih1": u(ks[4], (4 * HIDDEN_DIM, HIDDEN_DIM)),
        "w_hh1": u(ks[5], (4 * HIDDEN_DIM, HIDDEN_DIM)),
        "b_ih1": u(ks[6], (4 * HIDDEN_DIM,)),
        "b_hh1": u(ks[7], (4 * HIDDEN_DIM,)),
        "w_fc":  u(ks[8], (OUTPUT_DIM, HIDDEN_DIM)),
        "b_fc":  u(ks[9], (OUTPUT_DIM,)),
    }


def pack_params(raw):
    """Keep only [i, g, o] gates (PyTorch order i,f,g,o), lay gates out in 64-row
    sublane slots, fold b_ih + b_hh (valid since h_prev == 0), and fold the layer-0
    bias into the ones-row column of w0."""
    H = HIDDEN_DIM
    gate_order = (0, 2, 3)                                 # i, g, o

    w0 = jnp.zeros((GATE_ROWS, K0), jnp.float32)
    w1 = jnp.zeros((GATE_ROWS, H_PAD), jnp.float32)
    b1 = jnp.zeros((GATE_ROWS, 1), jnp.float32)
    for slot, gate in enumerate(gate_order):
        r0 = slot * H_PAD
        sl = slice(gate * H, (gate + 1) * H)
        w0 = w0.at[r0:r0 + H, :INPUT_DIM].set(raw["w_ih0"][sl, :])
        w0 = w0.at[r0:r0 + H, INPUT_DIM].set(raw["b_ih0"][sl] + raw["b_hh0"][sl])
        w1 = w1.at[r0:r0 + H, :H].set(raw["w_ih1"][sl, :])
        b1 = b1.at[r0:r0 + H, 0].set(raw["b_ih1"][sl] + raw["b_hh1"][sl])
    w_fc = jnp.zeros((H_PAD, 1), jnp.float32).at[:H, 0].set(raw["w_fc"][0])
    b_fc = raw["b_fc"].reshape(1, 1)
    return {"w0": w0, "w1": w1, "b1": b1, "w_fc": w_fc, "b_fc": b_fc}


def reference_forward(x, raw):
    """Pure-JAX reference with the FULL LSTM cell math (f-gate, W_hh, explicit zero state)."""
    H = HIDDEN_DIM

    def cell(inp, h_prev, c_prev, w_ih, w_hh, b_ih, b_hh):
        gates = inp @ w_ih.T + h_prev @ w_hh.T + b_ih + b_hh
        i = jax.nn.sigmoid(gates[:, 0 * H:1 * H])
        f = jax.nn.sigmoid(gates[:, 1 * H:2 * H])
        g = jnp.tanh(gates[:, 2 * H:3 * H])
        o = jax.nn.sigmoid(gates[:, 3 * H:4 * H])
        c = f * c_prev + i * g
        return o * jnp.tanh(c), c

    n = x.shape[0]
    h0 = jnp.zeros((n, H), jnp.float32)
    c0 = jnp.zeros((n, H), jnp.float32)
    h1, _ = cell(x, h0, c0, raw["w_ih0"], raw["w_hh0"], raw["b_ih0"], raw["b_hh0"])
    h2, _ = cell(h1, h0, c0, raw["w_ih1"], raw["w_hh1"], raw["b_ih1"], raw["b_hh1"])
    return h2 @ raw["w_fc"].T + raw["b_fc"]


if __name__ == "__main__":
    key = jax.random.PRNGKey(0)
    k_x, k_p = jax.random.split(key)

    raw = init_raw_params(k_p)
    params = pack_params(raw)

    # Small shape (single 128-lane tile).
    N = 8
    x = jax.random.normal(k_x, (N, INPUT_DIM), jnp.float32)
    out = jax.block_until_ready(lstm_model_forward(x, params))
    ref = reference_forward(x, raw)
    assert out.shape == (N, OUTPUT_DIM)
    assert jnp.allclose(out, ref, atol=1e-4, rtol=1e-4), float(jnp.max(jnp.abs(out - ref)))

    # Ragged batch exercising the multi-block grid + padded-column slicing.
    N2 = 300
    x2 = jax.random.normal(jax.random.fold_in(k_x, 1), (N2, INPUT_DIM), jnp.float32)
    out2 = jax.block_until_ready(lstm_model_forward(x2, params))
    ref2 = reference_forward(x2, raw)
    assert out2.shape == (N2, OUTPUT_DIM)
    assert jnp.allclose(out2, ref2, atol=1e-4, rtol=1e-4), float(jnp.max(jnp.abs(out2 - ref2)))

    print("KERNEL_OK")
</pallas_src>

<mosaic_0001>
module attributes {stable_mosaic.version = 11 : i64} {
  func.func @lstm_fc_kernel(%arg0: i32, %arg1: memref<8x128xf32, #tpu.memory_space<vmem>>, %arg2: memref<192x8xf32, #tpu.memory_space<vmem>>, %arg3: memref<192x64xf32, #tpu.memory_space<vmem>>, %arg4: memref<192x1xf32, #tpu.memory_space<vmem>>, %arg5: memref<64x1xf32, #tpu.memory_space<vmem>>, %arg6: memref<1x1xf32, #tpu.memory_space<smem>>, %arg7: memref<1x1x128xf32, #tpu.memory_space<vmem>>) attributes {dimension_semantics = [#tpu.dimension_semantics<parallel>], iteration_bounds = array<i64: 1>, scalar_prefetch = 0 : i64, scratch_operands = 0 : i64, tpu.core_type = #tpu.core_type<tc>, window_params = [{transform_indices = @transform_0, window_bounds = array<i64: 8, 128>}, {pipeline_mode = #tpu.pipeline_mode<synchronous>, transform_indices = @transform_1, window_bounds = array<i64: 192, 8>}, {pipeline_mode = #tpu.pipeline_mode<synchronous>, transform_indices = @transform_2, window_bounds = array<i64: 192, 64>}, {pipeline_mode = #tpu.pipeline_mode<synchronous>, transform_indices = @transform_3, window_bounds = array<i64: 192, 1>}, {pipeline_mode = #tpu.pipeline_mode<synchronous>, transform_indices = @transform_4, window_bounds = array<i64: 64, 1>}, {transform_indices = @transform_5, window_bounds = array<i64: 1, 1>}, {transform_indices = @transform_6, window_bounds = array<i64: 1, 1, 128>}]} {
    %c0 = arith.constant 0 : index
    %c0_0 = arith.constant 0 : index
    %0 = vector.load %arg2[%c0, %c0_0] : memref<192x8xf32, #tpu.memory_space<vmem>>, vector<192x8xf32>
    %c0_1 = arith.constant 0 : index
    %c0_2 = arith.constant 0 : index
    %1 = vector.load %arg1[%c0_1, %c0_2] : memref<8x128xf32, #tpu.memory_space<vmem>>, vector<8x128xf32>
    %cst = arith.constant dense<0.000000e+00> : vector<192x128xf32>
    %2 = tpu.matmul %0, %1, %cst {dimension_numbers = #tpu.dot_dimension_numbers<[1], [0], [0], [1], [0, 0, 1, 1], [], []>} : vector<192x8xf32>, vector<8x128xf32>, vector<192x128xf32> -> vector<192x128xf32>
    %3 = vector.extract_strided_slice %2 {offsets = [0, 0], sizes = [64, 128], strides = [1, 1]} : vector<192x128xf32> to vector<64x128xf32>
    %4 = arith.negf %3 : vector<64x128xf32>
    %5 = math.exp %4 : vector<64x128xf32>
    %cst_3 = arith.constant 1.000000e+00 : f32
    %6 = vector.broadcast %cst_3 : f32 to vector<64x128xf32>
    %7 = arith.addf %6, %5 : vector<64x128xf32>
    %8 = arith.divf %6, %7 : vector<64x128xf32>
    %9 = vector.extract_strided_slice %2 {offsets = [64, 0], sizes = [64, 128], strides = [1, 1]} : vector<192x128xf32> to vector<64x128xf32>
    %10 = math.tanh %9 : vector<64x128xf32>
    %11 = vector.extract_strided_slice %2 {offsets = [128, 0], sizes = [64, 128], strides = [1, 1]} : vector<192x128xf32> to vector<64x128xf32>
    %12 = arith.negf %11 : vector<64x128xf32>
    %13 = math.exp %12 : vector<64x128xf32>
    %cst_4 = arith.constant 1.000000e+00 : f32
    %14 = vector.broadcast %cst_4 : f32 to vector<64x128xf32>
    %15 = arith.addf %14, %13 : vector<64x128xf32>
    %16 = arith.divf %14, %15 : vector<64x128xf32>
    %17 = arith.mulf %8, %10 : vector<64x128xf32>
    %18 = math.tanh %17 : vector<64x128xf32>
    %19 = arith.mulf %16, %18 : vector<64x128xf32>
    %c0_5 = arith.constant 0 : index
    %c0_6 = arith.constant 0 : index
    %20 = vector.load %arg3[%c0_5, %c0_6] : memref<192x64xf32, #tpu.memory_space<vmem>>, vector<192x64xf32>
    %cst_7 = arith.constant dense<0.000000e+00> : vector<192x128xf32>
    %21 = tpu.matmul %20, %19, %cst_7 {dimension_numbers = #tpu.dot_dimension_numbers<[1], [0], [0], [1], [0, 0, 1, 1], [], []>} : vector<192x64xf32>, vector<64x128xf32>, vector<192x128xf32> -> vector<192x128xf32>
    %c0_8 = arith.constant 0 : index
    %c0_9 = arith.constant 0 : index
    %22 = vector.load %arg4[%c0_8, %c0_9] : memref<192x1xf32, #tpu.memory_space<vmem>>, vector<192x1xf32>
    %23 = vector.broadcast %22 : vector<192x1xf32> to vector<192x128xf32>
    %24 = arith.addf %21, %23 : vector<192x128xf32>
    %25 = vector.extract_strided_slice %24 {offsets = [0, 0], sizes = [64, 128], strides = [1, 1]} : vector<192x128xf32> to vector<64x128xf32>
    %26 = arith.negf %25 : vector<64x128xf32>
    %27 = math.exp %26 : vector<64x128xf32>
    %cst_10 = arith.constant 1.000000e+00 : f32
    %28 = vector.broadcast %cst_10 : f32 to vector<64x128xf32>
    %29 = arith.addf %28, %27 : vector<64x128xf32>
    %30 = arith.divf %28, %29 : vector<64x128xf32>
    %31 = vector.extract_strided_slice %24 {offsets = [64, 0], sizes = [64, 128], strides = [1, 1]} : vector<192x128xf32> to vector<64x128xf32>
    %32 = math.tanh %31 : vector<64x128xf32>
    %33 = vector.extract_strided_slice %24 {offsets = [128, 0], sizes = [64, 128], strides = [1, 1]} : vector<192x128xf32> to vector<64x128xf32>
    %34 = arith.negf %33 : vector<64x128xf32>
    %35 = math.exp %34 : vector<64x128xf32>
    %cst_11 = arith.constant 1.000000e+00 : f32
    %36 = vector.broadcast %cst_11 : f32 to vector<64x128xf32>
    %37 = arith.addf %36, %35 : vector<64x128xf32>
    %38 = arith.divf %36, %37 : vector<64x128xf32>
    %39 = arith.mulf %30, %32 : vector<64x128xf32>
    %40 = math.tanh %39 : vector<64x128xf32>
    %41 = arith.mulf %38, %40 : vector<64x128xf32>
    %c0_12 = arith.constant 0 : index
    %c0_13 = arith.constant 0 : index
    %42 = vector.load %arg5[%c0_12, %c0_13] : memref<64x1xf32, #tpu.memory_space<vmem>>, vector<64x1xf32>
    %43 = vector.broadcast %42 : vector<64x1xf32> to vector<64x128xf32>
    %44 = arith.mulf %41, %43 : vector<64x128xf32>
    %cst_14 = arith.constant dense<0.000000e+00> : vector<128xf32>
    %45 = vector.multi_reduction <add>, %44, %cst_14 [0] : vector<64x128xf32> to vector<128xf32>
    %46 = vector.shape_cast %45 : vector<128xf32> to vector<1x128xf32>
    %c0_15 = arith.constant 0 : index
    %c0_16 = arith.constant 0 : index
    %47 = memref.load %arg6[%c0_15, %c0_16] : memref<1x1xf32, #tpu.memory_space<smem>>
    %48 = vector.broadcast %47 : f32 to vector<1x128xf32>
    %49 = arith.addf %46, %48 : vector<1x128xf32>
    %50 = vector.shape_cast %49 : vector<1x128xf32> to vector<1x1x128xf32>
    %c0_17 = arith.constant 0 : index
    %c0_18 = arith.constant 0 : index
    %c0_19 = arith.constant 0 : index
    %51 = vector.load %arg7[%c0_17, %c0_18, %c0_19] : memref<1x1x128xf32, #tpu.memory_space<vmem>>, vector<1x1x128xf32>
    tpu.vector_store %arg7[%c0_17, %c0_18, %c0_19], %50 {strides = array<i32>} : memref<1x1x128xf32, #tpu.memory_space<vmem>>, vector<1x1x128xf32>,
    return
  }
  func.func @transform_0(%arg0: i32) -> (i32, i32) {
    %c0_i32 = arith.constant 0 : i32
    %c0_i32_0 = arith.constant 0 : i32
    return %c0_i32, %arg0 : i32, i32
  }
  func.func @transform_1(%arg0: i32) -> (i32, i32) {
    %c0_i32 = arith.constant 0 : i32
    %c0_i32_0 = arith.constant 0 : i32
    %c0_i32_1 = arith.constant 0 : i32
    return %c0_i32, %c0_i32_0 : i32, i32
  }
  func.func @transform_2(%arg0: i32) -> (i32, i32) {
    %c0_i32 = arith.constant 0 : i32
    %c0_i32_0 = arith.constant 0 : i32
    %c0_i32_1 = arith.constant 0 : i32
    return %c0_i32, %c0_i32_0 : i32, i32
  }
  func.func @transform_3(%arg0: i32) -> (i32, i32) {
    %c0_i32 = arith.constant 0 : i32
    %c0_i32_0 = arith.constant 0 : i32
    %c0_i32_1 = arith.constant 0 : i32
    return %c0_i32, %c0_i32_0 : i32, i32
  }
  func.func @transform_4(%arg0: i32) -> (i32, i32) {
    %c0_i32 = arith.constant 0 : i32
    %c0_i32_0 = arith.constant 0 : i32
    %c0_i32_1 = arith.constant 0 : i32
    return %c0_i32, %c0_i32_0 : i32, i32
  }
  func.func @transform_5(%arg0: i32) -> (i32, i32) {
    %c0_i32 = arith.constant 0 : i32
    %c0_i32_0 = arith.constant 0 : i32
    %c0_i32_1 = arith.constant 0 : i32
    return %c0_i32, %c0_i32_0 : i32, i32
  }
  func.func @transform_6(%arg0: i32) -> (i32, i32, i32) {
    %c0_i32 = arith.constant 0 : i32
    %c0_i32_0 = arith.constant 0 : i32
    %c0_i32_1 = arith.constant 0 : i32
    return %arg0, %c0_i32, %c0_i32_0 : i32, i32, i32
  }
}

</mosaic_0001>

<llo_original>
// kernel: lstm_model_forward.1
$region0: #{lstm_model_forward.1}
  #allocation0 [shape = 'u32[]', space=smem, size = 0x4, offset = 0x4, fixed_abs, tag = 'smem constant byte address 0x4 - core index']
  #allocation1 [shape = 'u32[72,128]{1,0:T(1,128)}', space=vmem, size = 0x9000, scoped, tag = 'internal scratch']
  #allocation2 [shape = 'f32[1,1]{1,0:T(1,128)S(6)}', space=smem, size = 0x200, scoped, tag = 'scoped memory for lstm_model_forward.1']
  %s0 = inlined_call_operand.vmem [shape: f32[8,128], index: 0, kind: input, shape index: {}]
  %s1 = inlined_call_operand.vmem [shape: f32[192,8], index: 1, kind: input, shape index: {}]
  %s2 = inlined_call_operand.vmem [shape: f32[192,64], index: 2, kind: input, shape index: {}]
  %s3 = inlined_call_operand.vmem [shape: f32[192,1], index: 3, kind: input, shape index: {}]
  %s4 = inlined_call_operand.vmem [shape: f32[64,1], index: 4, kind: input, shape index: {}]
  %s5 = inlined_call_operand.<no memory space> [shape: f32[1,1], index: 5, kind: input, shape index: {}]
  %s6 = inlined_call_operand.vmem [shape: f32[1,1,128], index: 6, kind: output, shape index: {}]
  %s7 = sld [smem:[#allocation0]]
  $region34: #{lstm_model_forward.1} parent=0
    _
  %s9 = ssub.s32 1, %s7
  %s10 = scalar_select 0, %s9, %s7
  %11 = sst [smem:[#allocation2]] %s5
  // Predicated region
  $region2: #{lstm_model_forward.1} parent=0 // pred_check
    _
  $region3: #{lstm_model_forward.1} parent=0 // pred_check_branch
    %13 = sbr.rel (0) target = $region5
  $region4: #{lstm_model_forward.1} parent=0 // pred_region
    _
  $region5: #{lstm_model_forward.1} parent=0 // pred_fallthru
    _
  // Predicated region
  $region6: #{lstm_model_forward.1} parent=0 // pred_check
    _
  $region7: #{lstm_model_forward.1} parent=0 // pred_check_branch
    %15 = sbr.rel (0) target = $region9
  $region8: #{lstm_model_forward.1} parent=0 // pred_region
    _
  $region9: #{lstm_model_forward.1} parent=0 // pred_fallthru
    _
  // Predicated region
  $region10: #{lstm_model_forward.1} parent=0 // pred_check
    _
  $region11: #{lstm_model_forward.1} parent=0 // pred_check_branch
    %17 = sbr.rel (0) target = $region13
  $region12: #{lstm_model_forward.1} parent=0 // pred_region
    _
  $region13: #{lstm_model_forward.1} parent=0 // pred_fallthru
    _
  // Predicated region
  $region14: #{lstm_model_forward.1} parent=0 // pred_check
    _
  $region15: #{lstm_model_forward.1} parent=0 // pred_check_branch
    %19 = sbr.rel (0) target = $region17
  $region16: #{lstm_model_forward.1} parent=0 // pred_region
    _
  $region17: #{lstm_model_forward.1} parent=0 // pred_fallthru
    _
  // Predicated region
  $region18: #{lstm_model_forward.1} parent=0 // pred_check
    _
  $region19: #{lstm_model_forward.1} parent=0 // pred_check_branch
    %21 = sbr.rel (0) target = $region21
  $region20: #{lstm_model_forward.1} parent=0 // pred_region
    _
  $region21: #{lstm_model_forward.1} parent=0 // pred_fallthru
    _
  // Predicated region
  $region22: #{lstm_model_forward.1} parent=0 // pred_check
    _
  $region23: #{lstm_model_forward.1} parent=0 // pred_check_branch
    %23 = sbr.rel (0) target = $region25
  $region24: #{lstm_model_forward.1} parent=0 // pred_region
    _
  $region25: #{lstm_model_forward.1} parent=0 // pred_fallthru
    _
  %v24 = vld [vmem:[%s1] sm:$0xff]
  %v25 = vld [vmem:[%s1 + $0x8] sm:$0xff]
  %v26 = vld [vmem:[%s1 + $0x10] sm:$0xff]
  %v27 = vld [vmem:[%s1 + $0x18] sm:$0xff]
  %v28 = vld [vmem:[%s1 + $0x20] sm:$0xff]
  %v29 = vld [vmem:[%s1 + $0x28] sm:$0xff]
  %v30 = vld [vmem:[%s1 + $0x30] sm:$0xff]
  %v31 = vld [vmem:[%s1 + $0x38] sm:$0xff]
  %v32 = vld [vmem:[%s1 + $0x40] sm:$0xff]
  %v33 = vld [vmem:[%s1 + $0x48] sm:$0xff]
  %v34 = vld [vmem:[%s1 + $0x50] sm:$0xff]
  %v35 = vld [vmem:[%s1 + $0x58] sm:$0xff]
  %v36 = vld [vmem:[%s1 + $0x60] sm:$0xff]
  %v37 = vld [vmem:[%s1 + $0x68] sm:$0xff]
  %v38 = vld [vmem:[%s1 + $0x70] sm:$0xff]
  %v39 = vld [vmem:[%s1 + $0x78] sm:$0xff]
  %v40 = vld [vmem:[%s1 + $0x80] sm:$0xff]
  %v41 = vld [vmem:[%s1 + $0x88] sm:$0xff]
  %v42 = vld [vmem:[%s1 + $0x90] sm:$0xff]
  %v43 = vld [vmem:[%s1 + $0x98] sm:$0xff]
  %v44 = vld [vmem:[%s1 + $0xa0] sm:$0xff]
  %v45 = vld [vmem:[%s1 + $0xa8] sm:$0xff]
  %v46 = vld [vmem:[%s1 + $0xb0] sm:$0xff]
  %v47 = vld [vmem:[%s1 + $0xb8] sm:$0xff]
  %v48 = vld [vmem:[%s0] sm:$0xff]
  %vm49 = vcmask 64512
  %v51 = vsel %vm49, %v24, 0
  %v54 = vsel %vm49, %v25, 0
  %v57 = vsel %vm49, %v26, 0
  %v60 = vsel %vm49, %v27, 0
  %v63 = vsel %vm49, %v28, 0
  %v66 = vsel %vm49, %v29, 0
  %v69 = vsel %vm49, %v30, 0
  %v72 = vsel %vm49, %v31, 0
  %v75 = vsel %vm49, %v32, 0
  %v78 = vsel %vm49, %v33, 0
  %v81 = vsel %vm49, %v34, 0
  %v84 = vsel %vm49, %v35, 0
  %v87 = vsel %vm49, %v36, 0
  %v90 = vsel %vm49, %v37, 0
  %v93 = vsel %vm49, %v38, 0
  %v96 = vsel %vm49, %v39, 0
  %v99 = vsel %vm49, %v40, 0
  %v102 = vsel %vm49, %v41, 0
  %v105 = vsel %vm49, %v42, 0
  %v108 = vsel %vm49, %v43, 0
  %v111 = vsel %vm49, %v44, 0
  %v114 = vsel %vm49, %v45, 0
  %v117 = vsel %vm49, %v46, 0
  %v120 = vsel %vm49, %v47, 0
  %122 = vmatpush.msra.mxu0 0.0
  %123 = vmatpush.msra.mxu0 0.0
  %124 = vmatpush.msra.mxu0 0.0
  %125 = vmatpush.msra.mxu0 0.0
  %126 = vmatpush.msra.mxu0 0.0
  %127 = vmatpush.msra.mxu0 0.0
  %128 = vmatpush.msra.mxu0 0.0
  %129 = vmatpush.msra.mxu0 0.0
  %130 = vmatpush.msra.mxu0 0.0
  %131 = vmatpush.msra.mxu0 0.0
  %132 = vmatpush.msra.mxu0 0.0
  %133 = vmatpush.msra.mxu0 0.0
  %134 = vmatpush.msra.mxu0 0.0
  %135 = vmatpush.msra.mxu0 0.0
  %136 = vmatpush.msra.mxu0 0.0
  %137 = vmatpush.msra.mxu0 %v48
  %138 = vmatmul.f32.gmra.mxu0 %v51
  %v139 = vpop.f32.mrf.mxu0
  %v140 = vadd.f32 0.0, %v139
  %141 = vmatmul.f32.gmra.mxu0 %v54
  %v142 = vpop.f32.mrf.mxu0
  %v143 = vadd.f32 0.0, %v142
  %144 = vmatmul.f32.gmra.mxu0 %v57
  %v145 = vpop.f32.mrf.mxu0
  %v146 = vadd.f32 0.0, %v145
  %147 = vmatmul.f32.gmra.mxu0 %v60
  %v148 = vpop.f32.mrf.mxu0
  %v149 = vadd.f32 0.0, %v148
  %150 = vmatmul.f32.gmra.mxu0 %v63
  %v151 = vpop.f32.mrf.mxu0
  %v152 = vadd.f32 0.0, %v151
  %153 = vmatmul.f32.gmra.mxu0 %v66
  %v154 = vpop.f32.mrf.mxu0
  %v155 = vadd.f32 0.0, %v154
  %156 = vmatmul.f32.gmra.mxu0 %v69
  %v157 = vpop.f32.mrf.mxu0
  %v158 = vadd.f32 0.0, %v157
  %159 = vmatmul.f32.gmra.mxu0 %v72
  %v160 = vpop.f32.mrf.mxu0
  %v161 = vadd.f32 0.0, %v160
  %162 = vmatmul.f32.gmra.mxu0 %v75
  %v163 = vpop.f32.mrf.mxu0
  %v164 = vadd.f32 0.0, %v163
  %165 = vmatmul.f32.gmra.mxu0 %v78
  %v166 = vpop.f32.mrf.mxu0
  %v167 = vadd.f32 0.0, %v166
  %168 = vmatmul.f32.gmra.mxu0 %v81
  %v169 = vpop.f32.mrf.mxu0
  %v170 = vadd.f32 0.0, %v169
  %171 = vmatmul.f32.gmra.mxu0 %v84
  %v172 = vpop.f32.mrf.mxu0
  %v173 = vadd.f32 0.0, %v172
  %174 = vmatmul.f32.gmra.mxu0 %v87
  %v175 = vpop.f32.mrf.mxu0
  %v176 = vadd.f32 0.0, %v175
  %177 = vmatmul.f32.gmra.mxu0 %v90
  %v178 = vpop.f32.mrf.mxu0
  %v179 = vadd.f32 0.0, %v178
  %180 = vmatmul.f32.gmra.mxu0 %v93
  %v181 = vpop.f32.mrf.mxu0
  %v182 = vadd.f32 0.0, %v181
  %183 = vmatmul.f32.gmra.mxu0 %v96
  %v184 = vpop.f32.mrf.mxu0
  %v185 = vadd.f32 0.0, %v184
  %186 = vmatmul.f32.gmra.mxu0 %v99
  %v187 = vpop.f32.mrf.mxu0
  %v188 = vadd.f32 0.0, %v187
  %189 = vmatmul.f32.gmra.mxu0 %v102
  %v190 = vpop.f32.mrf.mxu0
  %v191 = vadd.f32 0.0, %v190
  %192 = vmatmul.f32.gmra.mxu0 %v105
  %v193 = vpop.f32.mrf.mxu0
  %v194 = vadd.f32 0.0, %v193
  %195 = vmatmul.f32.gmra.mxu0 %v108
  %v196 = vpop.f32.mrf.mxu0
  %v197 = vadd.f32 0.0, %v196
  %198 = vmatmul.f32.gmra.mxu0 %v111
  %v199 = vpop.f32.mrf.mxu0
  %v200 = vadd.f32 0.0, %v199
  %201 = vmatmul.f32.gmra.mxu0 %v114
  %v202 = vpop.f32.mrf.mxu0
  %v203 = vadd.f32 0.0, %v202
  %204 = vmatmul.f32.gmra.mxu0 %v117
  %v205 = vpop.f32.mrf.mxu0
  %v206 = vadd.f32 0.0, %v205
  %207 = vmatmul.f32.gmra.mxu0 %v120
  %v208 = vpop.f32.mrf.mxu0
  %v209 = vadd.f32 0.0, %v208
  %210 = vdwg.mxu0
  %v211 = vxor.u32 %v140, 2147483648
  %v212 = vxor.u32 %v143, 2147483648
  %v213 = vxor.u32 %v146, 2147483648
  %v214 = vxor.u32 %v149, 2147483648
  %v215 = vxor.u32 %v152, 2147483648
  %v216 = vxor.u32 %v155, 2147483648
  %v217 = vxor.u32 %v158, 2147483648
  %v218 = vxor.u32 %v161, 2147483648
  %v219 = vmul.f32 %v211, 1.442695
  %v220 = vpow.pop %v219
  %v221 = vmul.f32 %v212, 1.442695
  %v222 = vpow.pop %v221
  %v223 = vmul.f32 %v213, 1.442695
  %v224 = vpow.pop %v223
  %v225 = vmul.f32 %v214, 1.442695
  %v226 = vpow.pop %v225
  %v227 = vmul.f32 %v215, 1.442695
  %v228 = vpow.pop %v227
  %v229 = vmul.f32 %v216, 1.442695
  %v230 = vpow.pop %v229
  %v231 = vmul.f32 %v217, 1.442695
  %v232 = vpow.pop %v231
  %v233 = vmul.f32 %v218, 1.442695
  %v234 = vpow.pop %v233
  %v235 = vadd.f32 %v220, 1.0
  %v236 = vadd.f32 %v222, 1.0
  %v237 = vadd.f32 %v224, 1.0
  %v238 = vadd.f32 %v226, 1.0
  %v239 = vadd.f32 %v228, 1.0
  %v240 = vadd.f32 %v230, 1.0
  %v241 = vadd.f32 %v232, 1.0
  %v242 = vadd.f32 %v234, 1.0
  %v243 = vrcp.pop %v235
  %v244 = vmul.f32 %v235, %v243
  %v245 = vsub.f32 1.0, %v244
  %v246 = vmul.f32 %v243, %v245
  %v247 = vadd.f32 %v243, %v246
  %vm248 = vweird.f32 %v235
  %vm249 = vweird.f32 %v243
  %vm250 = vmor %vm248, %vm249
  %v251 = vsel %vm250, %v243, %v247
  %v252 = vand.u32 2147483647, %v235
  %vm253 = vcmp.eq.f32.partialorder %v252, 8.507059e+37
  %v254 = vand.u32 %v235, 2147483648
  %v255 = vor.u32 1.1754944e-38, %v254
  %v256 = vsel %vm253, %v255, %v251
  %v257 = vmul.f32 1.0, %v256
  %v258 = vrcp.pop %v236
  %v259 = vmul.f32 %v236, %v258
  %v260 = vsub.f32 1.0, %v259
  %v261 = vmul.f32 %v258, %v260
  %v262 = vadd.f32 %v258, %v261
  %vm263 = vweird.f32 %v236
  %vm264 = vweird.f32 %v258
  %vm265 = vmor %vm263, %vm264
  %v266 = vsel %vm265, %v258, %v262
  %v267 = vand.u32 2147483647, %v236
  %vm268 = vcmp.eq.f32.partialorder %v267, 8.507059e+37
  %v269 = vand.u32 %v236, 2147483648
  %v270 = vor.u32 1.1754944e-38, %v269
  %v271 = vsel %vm268, %v270, %v266
  %v272 = vmul.f32 1.0, %v271
  %v273 = vrcp.pop %v237
  %v274 = vmul.f32 %v237, %v273
  %v275 = vsub.f32 1.0, %v274
  %v276 = vmul.f32 %v273, %v275
  %v277 = vadd.f32 %v273, %v276
  %vm278 = vweird.f32 %v237
  %vm279 = vweird.f32 %v273
  %vm280 = vmor %vm278, %vm279
  %v281 = vsel %vm280, %v273, %v277
  %v282 = vand.u32 2147483647, %v237
  %vm283 = vcmp.eq.f32.partialorder %v282, 8.507059e+37
  %v284 = vand.u32 %v237, 2147483648
  %v285 = vor.u32 1.1754944e-38, %v284
  %v286 = vsel %vm283, %v285, %v281
  %v287 = vmul.f32 1.0, %v286
  %v288 = vrcp.pop %v238
  %v289 = vmul.f32 %v238, %v288
  %v290 = vsub.f32 1.0, %v289
  %v291 = vmul.f32 %v288, %v290
  %v292 = vadd.f32 %v288, %v291
  %vm293 = vweird.f32 %v238
  %vm294 = vweird.f32 %v288
  %vm295 = vmor %vm293, %vm294
  %v296 = vsel %vm295, %v288, %v292
  %v297 = vand.u32 2147483647, %v238
  %vm298 = vcmp.eq.f32.partialorder %v297, 8.507059e+37
  %v299 = vand.u32 %v238, 2147483648
  %v300 = vor.u32 1.1754944e-38, %v299
  %v301 = vsel %vm298, %v300, %v296
  %v302 = vmul.f32 1.0, %v301
  %v303 = vrcp.pop %v239
  %v304 = vmul.f32 %v239, %v303
  %v305 = vsub.f32 1.0, %v304
  %v306 = vmul.f32 %v303, %v305
  %v307 = vadd.f32 %v303, %v306
  %vm308 = vweird.f32 %v239
  %vm309 = vweird.f32 %v303
  %vm310 = vmor %vm308, %vm309
  %v311 = vsel %vm310, %v303, %v307
  %v312 = vand.u32 2147483647, %v239
  %vm313 = vcmp.eq.f32.partialorder %v312, 8.507059e+37
  %v314 = vand.u32 %v239, 2147483648
  %v315 = vor.u32 1.1754944e-38, %v314
  %v316 = vsel %vm313, %v315, %v311
  %v317 = vmul.f32 1.0, %v316
  %v318 = vrcp.pop %v240
  %v319 = vmul.f32 %v240, %v318
  %v320 = vsub.f32 1.0, %v319
  %v321 = vmul.f32 %v318, %v320
  %v322 = vadd.f32 %v318, %v321
  %vm323 = vweird.f32 %v240
  %vm324 = vweird.f32 %v318
  %vm325 = vmor %vm323, %vm324
  %v326 = vsel %vm325, %v318, %v322
  %v327 = vand.u32 2147483647, %v240
  %vm328 = vcmp.eq.f32.partialorder %v327, 8.507059e+37
  %v329 = vand.u32 %v240, 2147483648
  %v330 = vor.u32 1.1754944e-38, %v329
  %v331 = vsel %vm328, %v330, %v326
  %v332 = vmul.f32 1.0, %v331
  %v333 = vrcp.pop %v241
  %v334 = vmul.f32 %v241, %v333
  %v335 = vsub.f32 1.0, %v334
  %v336 = vmul.f32 %v333, %v335
  %v337 = vadd.f32 %v333, %v336
  %vm338 = vweird.f32 %v241
  %vm339 = vweird.f32 %v333
  %vm340 = vmor %vm338, %vm339
  %v341 = vsel %vm340, %v333, %v337
  %v342 = vand.u32 2147483647, %v241
  %vm343 = vcmp.eq.f32.partialorder %v342, 8.507059e+37
  %v344 = vand.u32 %v241, 2147483648
  %v345 = vor.u32 1.1754944e-38, %v344
  %v346 = vsel %vm343, %v345, %v341
  %v347 = vmul.f32 1.0, %v346
  %v348 = vrcp.pop %v242
  %v349 = vmul.f32 %v242, %v348
  %v350 = vsub.f32 1.0, %v349
  %v351 = vmul.f32 %v348, %v350
  %v352 = vadd.f32 %v348, %v351
  %vm353 = vweird.f32 %v242
  %vm354 = vweird.f32 %v348
  %vm355 = vmor %vm353, %vm354
  %v356 = vsel %vm355, %v348, %v352
  %v357 = vand.u32 2147483647, %v242
  %vm358 = vcmp.eq.f32.partialorder %v357, 8.507059e+37
  %v359 = vand.u32 %v242, 2147483648
  %v360 = vor.u32 1.1754944e-38, %v359
  %v361 = vsel %vm358, %v360, %v356
  %v362 = vmul.f32 1.0, %v361
  %v363 = vtanh.pop %v164
  %v364 = vtanh.pop %v167
  %v365 = vtanh.pop %v170
  %v366 = vtanh.pop %v173
  %v367 = vtanh.pop %v176
  %v368 = vtanh.pop %v179
  %v369 = vtanh.pop %v182
  %v370 = vtanh.pop %v185
  %v371 = vxor.u32 %v188, 2147483648
  %v372 = vxor.u32 %v191, 2147483648
  %v373 = vxor.u32 %v194, 2147483648
  %v374 = vxor.u32 %v197, 2147483648
  %v375 = vxor.u32 %v200, 2147483648
  %v376 = vxor.u32 %v203, 2147483648
  %v377 = vxor.u32 %v206, 2147483648
  %v378 = vxor.u32 %v209, 2147483648
  %v379 = vmul.f32 %v371, 1.442695
  %v380 = vpow.pop %v379
  %v381 = vmul.f32 %v372, 1.442695
  %v382 = vpow.pop %v381
  %v383 = vmul.f32 %v373, 1.442695
  %v384 = vpow.pop %v383
  %v385 = vmul.f32 %v374, 1.442695
  %v386 = vpow.pop %v385
  %v387 = vmul.f32 %v375, 1.442695
  %v388 = vpow.pop %v387
  %v389 = vmul.f32 %v376, 1.442695
  %v390 = vpow.pop %v389
  %v391 = vmul.f32 %v377, 1.442695
  %v392 = vpow.pop %v391
  %v393 = vmul.f32 %v378, 1.442695
  %v394 = vpow.pop %v393
  %v395 = vadd.f32 %v380, 1.0
  %v396 = vadd.f32 %v382, 1.0
  %v397 = vadd.f32 %v384, 1.0
  %v398 = vadd.f32 %v386, 1.0
  %v399 = vadd.f32 %v388, 1.0
  %v400 = vadd.f32 %v390, 1.0
  %v401 = vadd.f32 %v392, 1.0
  %v402 = vadd.f32 %v394, 1.0
  %v403 = vrcp.pop %v395
  %v404 = vmul.f32 %v395, %v403
  %v405 = vsub.f32 1.0, %v404
  %v406 = vmul.f32 %v403, %v405
  %v407 = vadd.f32 %v403, %v406
  %vm408 = vweird.f32 %v395
  %vm409 = vweird.f32 %v403
  %vm410 = vmor %vm408, %vm409
  %v411 = vsel %vm410, %v403, %v407
  %v412 = vand.u32 2147483647, %v395
  %vm413 = vcmp.eq.f32.partialorder %v412, 8.507059e+37
  %v414 = vand.u32 %v395, 2147483648
  %v415 = vor.u32 1.1754944e-38, %v414
  %v416 = vsel %vm413, %v415, %v411
  %v417 = vmul.f32 1.0, %v416
  %v418 = vrcp.pop %v396
  %v419 = vmul.f32 %v396, %v418
  %v420 = vsub.f32 1.0, %v419
  %v421 = vmul.f32 %v418, %v420
  %v422 = vadd.f32 %v418, %v421
  %vm423 = vweird.f32 %v396
  %vm424 = vweird.f32 %v418
  %vm425 = vmor %vm423, %vm424
  %v426 = vsel %vm425, %v418, %v422
  %v427 = vand.u32 2147483647, %v396
  %vm428 = vcmp.eq.f32.partialorder %v427, 8.507059e+37
  %v429 = vand.u32 %v396, 2147483648
  %v430 = vor.u32 1.1754944e-38, %v429
  %v431 = vsel %vm428, %v430, %v426
  %v432 = vmul.f32 1.0, %v431
  %v433 = vrcp.pop %v397
  %v434 = vmul.f32 %v397, %v433
  %v435 = vsub.f32 1.0, %v434
  %v436 = vmul.f32 %v433, %v435
  %v437 = vadd.f32 %v433, %v436
  %vm438 = vweird.f32 %v397
  %vm439 = vweird.f32 %v433
  %vm440 = vmor %vm438, %vm439
  %v441 = vsel %vm440, %v433, %v437
  %v442 = vand.u32 2147483647, %v397
  %vm443 = vcmp.eq.f32.partialorder %v442, 8.507059e+37
  %v444 = vand.u32 %v397, 2147483648
  %v445 = vor.u32 1.1754944e-38, %v444
  %v446 = vsel %vm443, %v445, %v441
  %v447 = vmul.f32 1.0, %v446
  %v448 = vrcp.pop %v398
  %v449 = vmul.f32 %v398, %v448
  %v450 = vsub.f32 1.0, %v449
  %v451 = vmul.f32 %v448, %v450
  %v452 = vadd.f32 %v448, %v451
  %vm453 = vweird.f32 %v398
  %vm454 = vweird.f32 %v448
  %vm455 = vmor %vm453, %vm454
  %v456 = vsel %vm455, %v448, %v452
  %v457 = vand.u32 2147483647, %v398
  %vm458 = vcmp.eq.f32.partialorder %v457, 8.507059e+37
  %v459 = vand.u32 %v398, 2147483648
  %v460 = vor.u32 1.1754944e-38, %v459
  %v461 = vsel %vm458, %v460, %v456
  %v462 = vmul.f32 1.0, %v461
  %v463 = vrcp.pop %v399
  %v464 = vmul.f32 %v399, %v463
  %v465 = vsub.f32 1.0, %v464
  %v466 = vmul.f32 %v463, %v465
  %v467 = vadd.f32 %v463, %v466
  %vm468 = vweird.f32 %v399
  %vm469 = vweird.f32 %v463
  %vm470 = vmor %vm468, %vm469
  %v471 = vsel %vm470, %v463, %v467
  %v472 = vand.u32 2147483647, %v399
  %vm473 = vcmp.eq.f32.partialorder %v472, 8.507059e+37
  %v474 = vand.u32 %v399, 2147483648
  %v475 = vor.u32 1.1754944e-38, %v474
  %v476 = vsel %vm473, %v475, %v471
  %v477 = vmul.f32 1.0, %v476
  %v478 = vrcp.pop %v400
  %v479 = vmul.f32 %v400, %v478
  %v480 = vsub.f32 1.0, %v479
  %v481 = vmul.f32 %v478, %v480
  %v482 = vadd.f32 %v478, %v481
  %vm483 = vweird.f32 %v400
  %vm484 = vweird.f32 %v478
  %vm485 = vmor %vm483, %vm484
  %v486 = vsel %vm485, %v478, %v482
  %v487 = vand.u32 2147483647, %v400
  %vm488 = vcmp.eq.f32.partialorder %v487, 8.507059e+37
  %v489 = vand.u32 %v400, 2147483648
  %v490 = vor.u32 1.1754944e-38, %v489
  %v491 = vsel %vm488, %v490, %v486
  %v492 = vmul.f32 1.0, %v491
  %v493 = vrcp.pop %v401
  %v494 = vmul.f32 %v401, %v493
  %v495 = vsub.f32 1.0, %v494
  %v496 = vmul.f32 %v493, %v495
  %v497 = vadd.f32 %v493, %v496
  %vm498 = vweird.f32 %v401
  %vm499 = vweird.f32 %v493
  %vm500 = vmor %vm498, %vm499
  %v501 = vsel %vm500, %v493, %v497
  %v502 = vand.u32 2147483647, %v401
  %vm503 = vcmp.eq.f32.partialorder %v502, 8.507059e+37
  %v504 = vand.u32 %v401, 2147483648
  %v505 = vor.u32 1.1754944e-38, %v504
  %v506 = vsel %vm503, %v505, %v501
  %v507 = vmul.f32 1.0, %v506
  %v508 = vrcp.pop %v402
  %v509 = vmul.f32 %v402, %v508
  %v510 = vsub.f32 1.0, %v509
  %v511 = vmul.f32 %v508, %v510
  %v512 = vadd.f32 %v508, %v511
  %vm513 = vweird.f32 %v402
  %vm514 = vweird.f32 %v508
  %vm515 = vmor %vm513, %vm514
  %v516 = vsel %vm515, %v508, %v512
  %v517 = vand.u32 2147483647, %v402
  %vm518 = vcmp.eq.f32.partialorder %v517, 8.507059e+37
  %v519 = vand.u32 %v402, 2147483648
  %v520 = vor.u32 1.1754944e-38, %v519
  %v521 = vsel %vm518, %v520, %v516
  %v522 = vmul.f32 1.0, %v521
  %v523 = vmul.f32 %v257, %v363
  %v524 = vmul.f32 %v272, %v364
  %v525 = vmul.f32 %v287, %v365
  %v526 = vmul.f32 %v302, %v366
  %v527 = vmul.f32 %v317, %v367
  %v528 = vmul.f32 %v332, %v368
  %v529 = vmul.f32 %v347, %v369
  %v530 = vmul.f32 %v362, %v370
  %v531 = vtanh.pop %v523
  %v532 = vtanh.pop %v524
  %v533 = vtanh.pop %v525
  %v534 = vtanh.pop %v526
  %v535 = vtanh.pop %v527
  %v536 = vtanh.pop %v528
  %v537 = vtanh.pop %v529
  %v538 = vtanh.pop %v530
  %v539 = vmul.f32 %v417, %v531
  %v540 = vmul.f32 %v432, %v532
  %v541 = vmul.f32 %v447, %v533
  %v542 = vmul.f32 %v462, %v534
  %v543 = vmul.f32 %v477, %v535
  %v544 = vmul.f32 %v492, %v536
  %v545 = vmul.f32 %v507, %v537
  %v546 = vmul.f32 %v522, %v538
  %v547 = vld [vmem:[%s2] sm:$0xff]
  %v548 = vld [vmem:[%s2 + $0x8] sm:$0xff]
  %v549 = vld [vmem:[%s2 + $0x10] sm:$0xff]
  %v550 = vld [vmem:[%s2 + $0x18] sm:$0xff]
  %v551 = vld [vmem:[%s2 + $0x20] sm:$0xff]
  %v552 = vld [vmem:[%s2 + $0x28] sm:$0xff]
  %v553 = vld [vmem:[%s2 + $0x30] sm:$0xff]
  %v554 = vld [vmem:[%s2 + $0x38] sm:$0xff]
  %v555 = vld [vmem:[%s2 + $0x40] sm:$0xff]
  %v556 = vld [vmem:[%s2 + $0x48] sm:$0xff]
  %v557 = vld [vmem:[%s2 + $0x50] sm:$0xff]
  %v558 = vld [vmem:[%s2 + $0x58] sm:$0xff]
  %v559 = vld [vmem:[%s2 + $0x60] sm:$0xff]
  %v560 = vld [vmem:[%s2 + $0x68] sm:$0xff]
  %v561 = vld [vmem:[%s2 + $0x70] sm:$0xff]
  %v562 = vld [vmem:[%s2 + $0x78] sm:$0xff]
  %v563 = vld [vmem:[%s2 + $0x80] sm:$0xff]
  %v564 = vld [vmem:[%s2 + $0x88] sm:$0xff]
  %v565 = vld [vmem:[%s2 + $0x90] sm:$0xff]
  %v566 = vld [vmem:[%s2 + $0x98] sm:$0xff]
  %v567 = vld [vmem:[%s2 + $0xa0] sm:$0xff]
  %v568 = vld [vmem:[%s2 + $0xa8] sm:$0xff]
  %v569 = vld [vmem:[%s2 + $0xb0] sm:$0xff]
  %v570 = vld [vmem:[%s2 + $0xb8] sm:$0xff]
  %v571 = vld [vmem:[%s3] sm:$0xff]
  %v572 = vld [vmem:[%s3 + $0x8] sm:$0xff]
  %v573 = vld [vmem:[%s3 + $0x10] sm:$0xff]
  %v574 = vld [vmem:[%s3 + $0x18] sm:$0xff]
  %v575 = vld [vmem:[%s3 + $0x20] sm:$0xff]
  %v576 = vld [vmem:[%s3 + $0x28] sm:$0xff]
  %v577 = vld [vmem:[%s3 + $0x30] sm:$0xff]
  %v578 = vld [vmem:[%s3 + $0x38] sm:$0xff]
  %v579 = vld [vmem:[%s3 + $0x40] sm:$0xff]
  %v580 = vld [vmem:[%s3 + $0x48] sm:$0xff]
  %v581 = vld [vmem:[%s3 + $0x50] sm:$0xff]
  %v582 = vld [vmem:[%s3 + $0x58] sm:$0xff]
  %v583 = vld [vmem:[%s3 + $0x60] sm:$0xff]
  %v584 = vld [vmem:[%s3 + $0x68] sm:$0xff]
  %v585 = vld [vmem:[%s3 + $0x70] sm:$0xff]
  %v586 = vld [vmem:[%s3 + $0x78] sm:$0xff]
  %v587 = vld [vmem:[%s3 + $0x80] sm:$0xff]
  %v588 = vld [vmem:[%s3 + $0x88] sm:$0xff]
  %v589 = vld [vmem:[%s3 + $0x90] sm:$0xff]
  %v590 = vld [vmem:[%s3 + $0x98] sm:$0xff]
  %v591 = vld [vmem:[%s3 + $0xa0] sm:$0xff]
  %v592 = vld [vmem:[%s3 + $0xa8] sm:$0xff]
  %v593 = vld [vmem:[%s3 + $0xb0] sm:$0xff]
  %v594 = vld [vmem:[%s3 + $0xb8] sm:$0xff]
  %596 = vset.pattern.permute.xlu0 0
  %597 = vperm.xlu0 %596, %v571
  %v598 = vpop.permute.xlu0 %597
  %601 = vset.pattern.permute.xlu0 0
  %602 = vperm.xlu0 %601, %v572
  %v603 = vpop.permute.xlu0 %602
  %606 = vset.pattern.permute.xlu0 0
  %607 = vperm.xlu0 %606, %v573
  %v608 = vpop.permute.xlu0 %607
  %611 = vset.pattern.permute.xlu0 0
  %612 = vperm.xlu0 %611, %v574
  %v613 = vpop.permute.xlu0 %612
  %616 = vset.pattern.permute.xlu0 0
  %617 = vperm.xlu0 %616, %v575
  %v618 = vpop.permute.xlu0 %617
  %621 = vset.pattern.permute.xlu0 0
  %622 = vperm.xlu0 %621, %v576
  %v623 = vpop.permute.xlu0 %622
  %626 = vset.pattern.permute.xlu0 0
  %627 = vperm.xlu0 %626, %v577
  %v628 = vpop.permute.xlu0 %627
  %631 = vset.pattern.permute.xlu0 0
  %632 = vperm.xlu0 %631, %v578
  %v633 = vpop.permute.xlu0 %632
  %636 = vset.pattern.permute.xlu0 0
  %637 = vperm.xlu0 %636, %v579
  %v638 = vpop.permute.xlu0 %637
  %641 = vset.pattern.permute.xlu0 0
  %642 = vperm.xlu0 %641, %v580
  %v643 = vpop.permute.xlu0 %642
  %646 = vset.pattern.permute.xlu0 0
  %647 = vperm.xlu0 %646, %v581
  %v648 = vpop.permute.xlu0 %647
  %651 = vset.pattern.permute.xlu0 0
  %652 = vperm.xlu0 %651, %v582
  %v653 = vpop.permute.xlu0 %652
  %656 = vset.pattern.permute.xlu0 0
  %657 = vperm.xlu0 %656, %v583
  %v658 = vpop.permute.xlu0 %657
  %661 = vset.pattern.permute.xlu0 0
  %662 = vperm.xlu0 %661, %v584
  %v663 = vpop.permute.xlu0 %662
  %666 = vset.pattern.permute.xlu0 0
  %667 = vperm.xlu0 %666, %v585
  %v668 = vpop.permute.xlu0 %667
  %671 = vset.pattern.permute.xlu0 0
  %672 = vperm.xlu0 %671, %v586
  %v673 = vpop.permute.xlu0 %672
  %676 = vset.pattern.permute.xlu0 0
  %677 = vperm.xlu0 %676, %v587
  %v678 = vpop.permute.xlu0 %677
  %681 = vset.pattern.permute.xlu0 0
  %682 = vperm.xlu0 %681, %v588
  %v683 = vpop.permute.xlu0 %682
  %686 = vset.pattern.permute.xlu0 0
  %687 = vperm.xlu0 %686, %v589
  %v688 = vpop.permute.xlu0 %687
  %691 = vset.pattern.permute.xlu0 0
  %692 = vperm.xlu0 %691, %v590
  %v693 = vpop.permute.xlu0 %692
  %696 = vset.pattern.permute.xlu0 0
  %697 = vperm.xlu0 %696, %v591
  %v698 = vpop.permute.xlu0 %697
  %701 = vset.pattern.permute.xlu0 0
  %702 = vperm.xlu0 %701, %v592
  %v703 = vpop.permute.xlu0 %702
  %706 = vset.pattern.permute.xlu0 0
  %707 = vperm.xlu0 %706, %v593
  %v708 = vpop.permute.xlu0 %707
  %711 = vset.pattern.permute.xlu0 0
  %712 = vperm.xlu0 %711, %v594
  %v713 = vpop.permute.xlu0 %712
  %vm715 = vcmask 523264
  %v717 = vsel %vm715, %v547, 0
  %v720 = vsel %vm715, %v548, 0
  %v723 = vsel %vm715, %v549, 0
  %v726 = vsel %vm715, %v550, 0
  %v729 = vsel %vm715, %v551, 0
  %v732 = vsel %vm715, %v552, 0
  %v735 = vsel %vm715, %v553, 0
  %v738 = vsel %vm715, %v554, 0
  %v741 = vsel %vm715, %v555, 0
  %v744 = vsel %vm715, %v556, 0
  %v747 = vsel %vm715, %v557, 0
  %v750 = vsel %vm715, %v558, 0
  %v753 = vsel %vm715, %v559, 0
  %v756 = vsel %vm715, %v560, 0
  %v759 = vsel %vm715, %v561, 0
  %v762 = vsel %vm715, %v562, 0
  %v765 = vsel %vm715, %v563, 0
  %v768 = vsel %vm715, %v564, 0
  %v771 = vsel %vm715, %v565, 0
  %v774 = vsel %vm715, %v566, 0
  %v777 = vsel %vm715, %v567, 0
  %v780 = vsel %vm715, %v568, 0
  %v783 = vsel %vm715, %v569, 0
  %v786 = vsel %vm715, %v570, 0
  %788 = vmatpush.msra.mxu0 0.0
  %789 = vmatpush.msra.mxu0 0.0
  %790 = vmatpush.msra.mxu0 0.0
  %791 = vmatpush.msra.mxu0 0.0
  %792 = vmatpush.msra.mxu0 0.0
  %793 = vmatpush.msra.mxu0 0.0
  %794 = vmatpush.msra.mxu0 0.0
  %795 = vmatpush.msra.mxu0 0.0
  %796 = vmatpush.msra.mxu0 %v546
  %797 = vmatpush.msra.mxu0 %v545
  %798 = vmatpush.msra.mxu0 %v544
  %799 = vmatpush.msra.mxu0 %v543
  %800 = vmatpush.msra.mxu0 %v542
  %801 = vmatpush.msra.mxu0 %v541
  %802 = vmatpush.msra.mxu0 %v540
  %803 = vmatpush.msra.mxu0 %v539
  %804 = vmatmul.f32.gmra.mxu0 %v717
  %v805 = vpop.f32.mrf.mxu0
  %v806 = vadd.f32 %v598, %v805
  %807 = vmatmul.f32.gmra.mxu0 %v720
  %v808 = vpop.f32.mrf.mxu0
  %v809 = vadd.f32 %v603, %v808
  %810 = vmatmul.f32.gmra.mxu0 %v723
  %v811 = vpop.f32.mrf.mxu0
  %v812 = vadd.f32 %v608, %v811
  %813 = vmatmul.f32.gmra.mxu0 %v726
  %v814 = vpop.f32.mrf.mxu0
  %v815 = vadd.f32 %v613, %v814
  %816 = vmatmul.f32.gmra.mxu0 %v729
  %v817 = vpop.f32.mrf.mxu0
  %v818 = vadd.f32 %v618, %v817
  %819 = vmatmul.f32.gmra.mxu0 %v732
  %v820 = vpop.f32.mrf.mxu0
  %v821 = vadd.f32 %v623, %v820
  %822 = vmatmul.f32.gmra.mxu0 %v735
  %v823 = vpop.f32.mrf.mxu0
  %v824 = vadd.f32 %v628, %v823
  %825 = vmatmul.f32.gmra.mxu0 %v738
  %v826 = vpop.f32.mrf.mxu0
  %v827 = vadd.f32 %v633, %v826
  %828 = vmatmul.f32.gmra.mxu0 %v741
  %v829 = vpop.f32.mrf.mxu0
  %v830 = vadd.f32 %v638, %v829
  %831 = vmatmul.f32.gmra.mxu0 %v744
  %v832 = vpop.f32.mrf.mxu0
  %v833 = vadd.f32 %v643, %v832
  %834 = vmatmul.f32.gmra.mxu0 %v747
  %v835 = vpop.f32.mrf.mxu0
  %v836 = vadd.f32 %v648, %v835
  %837 = vmatmul.f32.gmra.mxu0 %v750
  %v838 = vpop.f32.mrf.mxu0
  %v839 = vadd.f32 %v653, %v838
  %840 = vmatmul.f32.gmra.mxu0 %v753
  %v841 = vpop.f32.mrf.mxu0
  %v842 = vadd.f32 %v658, %v841
  %843 = vmatmul.f32.gmra.mxu0 %v756
  %v844 = vpop.f32.mrf.mxu0
  %v845 = vadd.f32 %v663, %v844
  %846 = vmatmul.f32.gmra.mxu0 %v759
  %v847 = vpop.f32.mrf.mxu0
  %v848 = vadd.f32 %v668, %v847
  %849 = vmatmul.f32.gmra.mxu0 %v762
  %v850 = vpop.f32.mrf.mxu0
  %v851 = vadd.f32 %v673, %v850
  %852 = vmatmul.f32.gmra.mxu0 %v765
  %v853 = vpop.f32.mrf.mxu0
  %v854 = vadd.f32 %v678, %v853
  %855 = vmatmul.f32.gmra.mxu0 %v768
  %v856 = vpop.f32.mrf.mxu0
  %v857 = vadd.f32 %v683, %v856
  %858 = vmatmul.f32.gmra.mxu0 %v771
  %v859 = vpop.f32.mrf.mxu0
  %v860 = vadd.f32 %v688, %v859
  %861 = vmatmul.f32.gmra.mxu0 %v774
  %v862 = vpop.f32.mrf.mxu0
  %v863 = vadd.f32 %v693, %v862
  %864 = vmatmul.f32.gmra.mxu0 %v777
  %v865 = vpop.f32.mrf.mxu0
  %v866 = vadd.f32 %v698, %v865
  %867 = vmatmul.f32.gmra.mxu0 %v780
  %v868 = vpop.f32.mrf.mxu0
  %v869 = vadd.f32 %v703, %v868
  %870 = vmatmul.f32.gmra.mxu0 %v783
  %v871 = vpop.f32.mrf.mxu0
  %v872 = vadd.f32 %v708, %v871
  %873 = vmatmul.f32.gmra.mxu0 %v786
  %v874 = vpop.f32.mrf.mxu0
  %v875 = vadd.f32 %v713, %v874
  %876 = vdwg.mxu0
  %v877 = vxor.u32 %v806, 2147483648
  %v878 = vxor.u32 %v809, 2147483648
  %v879 = vxor.u32 %v812, 2147483648
  %v880 = vxor.u32 %v815, 2147483648
  %v881 = vxor.u32 %v818, 2147483648
  %v882 = vxor.u32 %v821, 2147483648
  %v883 = vxor.u32 %v824, 2147483648
  %v884 = vxor.u32 %v827, 2147483648
  %v885 = vmul.f32 %v877, 1.442695
  %v886 = vpow.pop %v885
  %v887 = vmul.f32 %v878, 1.442695
  %v888 = vpow.pop %v887
  %v889 = vmul.f32 %v879, 1.442695
  %v890 = vpow.pop %v889
  %v891 = vmul.f32 %v880, 1.442695
  %v892 = vpow.pop %v891
  %v893 = vmul.f32 %v881, 1.442695
  %v894 = vpow.pop %v893
  %v895 = vmul.f32 %v882, 1.442695
  %v896 = vpow.pop %v895
  %v897 = vmul.f32 %v883, 1.442695
  %v898 = vpow.pop %v897
  %v899 = vmul.f32 %v884, 1.442695
  %v900 = vpow.pop %v899
  %v901 = vadd.f32 %v886, 1.0
  %v902 = vadd.f32 %v888, 1.0
  %v903 = vadd.f32 %v890, 1.0
  %v904 = vadd.f32 %v892, 1.0
  %v905 = vadd.f32 %v894, 1.0
  %v906 = vadd.f32 %v896, 1.0
  %v907 = vadd.f32 %v898, 1.0
  %v908 = vadd.f32 %v900, 1.0
  %v909 = vrcp.pop %v901
  %v910 = vmul.f32 %v901, %v909
  %v911 = vsub.f32 1.0, %v910
  %v912 = vmul.f32 %v909, %v911
  %v913 = vadd.f32 %v909, %v912
  %vm914 = vweird.f32 %v901
  %vm915 = vweird.f32 %v909
  %vm916 = vmor %vm914, %vm915
  %v917 = vsel %vm916, %v909, %v913
  %v918 = vand.u32 2147483647, %v901
  %vm919 = vcmp.eq.f32.partialorder %v918, 8.507059e+37
  %v920 = vand.u32 %v901, 2147483648
  %v921 = vor.u32 1.1754944e-38, %v920
  %v922 = vsel %vm919, %v921, %v917
  %v923 = vmul.f32 1.0, %v922
  %v924 = vrcp.pop %v902
  %v925 = vmul.f32 %v902, %v924
  %v926 = vsub.f32 1.0, %v925
  %v927 = vmul.f32 %v924, %v926
  %v928 = vadd.f32 %v924, %v927
  %vm929 = vweird.f32 %v902
  %vm930 = vweird.f32 %v924
  %vm931 = vmor %vm929, %vm930
  %v932 = vsel %vm931, %v924, %v928
  %v933 = vand.u32 2147483647, %v902
  %vm934 = vcmp.eq.f32.partialorder %v933, 8.507059e+37
  %v935 = vand.u32 %v902, 2147483648
  %v936 = vor.u32 1.1754944e-38, %v935
  %v937 = vsel %vm934, %v936, %v932
  %v938 = vmul.f32 1.0, %v937
  %v939 = vrcp.pop %v903
  %v940 = vmul.f32 %v903, %v939
  %v941 = vsub.f32 1.0, %v940
  %v942 = vmul.f32 %v939, %v941
  %v943 = vadd.f32 %v939, %v942
  %vm944 = vweird.f32 %v903
  %vm945 = vweird.f32 %v939
  %vm946 = vmor %vm944, %vm945
  %v947 = vsel %vm946, %v939, %v943
  %v948 = vand.u32 2147483647, %v903
  %vm949 = vcmp.eq.f32.partialorder %v948, 8.507059e+37
  %v950 = vand.u32 %v903, 2147483648
  %v951 = vor.u32 1.1754944e-38, %v950
  %v952 = vsel %vm949, %v951, %v947
  %v953 = vmul.f32 1.0, %v952
  %v954 = vrcp.pop %v904
  %v955 = vmul.f32 %v904, %v954
  %v956 = vsub.f32 1.0, %v955
  %v957 = vmul.f32 %v954, %v956
  %v958 = vadd.f32 %v954, %v957
  %vm959 = vweird.f32 %v904
  %vm960 = vweird.f32 %v954
  %vm961 = vmor %vm959, %vm960
  %v962 = vsel %vm961, %v954, %v958
  %v963 = vand.u32 2147483647, %v904
  %vm964 = vcmp.eq.f32.partialorder %v963, 8.507059e+37
  %v965 = vand.u32 %v904, 2147483648
  %v966 = vor.u32 1.1754944e-38, %v965
  %v967 = vsel %vm964, %v966, %v962
  %v968 = vmul.f32 1.0, %v967
  %v969 = vrcp.pop %v905
  %v970 = vmul.f32 %v905, %v969
  %v971 = vsub.f32 1.0, %v970
  %v972 = vmul.f32 %v969, %v971
  %v973 = vadd.f32 %v969, %v972
  %vm974 = vweird.f32 %v905
  %vm975 = vweird.f32 %v969
  %vm976 = vmor %vm974, %vm975
  %v977 = vsel %vm976, %v969, %v973
  %v978 = vand.u32 2147483647, %v905
  %vm979 = vcmp.eq.f32.partialorder %v978, 8.507059e+37
  %v980 = vand.u32 %v905, 2147483648
  %v981 = vor.u32 1.1754944e-38, %v980
  %v982 = vsel %vm979, %v981, %v977
  %v983 = vmul.f32 1.0, %v982
  %v984 = vrcp.pop %v906
  %v985 = vmul.f32 %v906, %v984
  %v986 = vsub.f32 1.0, %v985
  %v987 = vmul.f32 %v984, %v986
  %v988 = vadd.f32 %v984, %v987
  %vm989 = vweird.f32 %v906
  %vm990 = vweird.f32 %v984
  %vm991 = vmor %vm989, %vm990
  %v992 = vsel %vm991, %v984, %v988
  %v993 = vand.u32 2147483647, %v906
  %vm994 = vcmp.eq.f32.partialorder %v993, 8.507059e+37
  %v995 = vand.u32 %v906, 2147483648
  %v996 = vor.u32 1.1754944e-38, %v995
  %v997 = vsel %vm994, %v996, %v992
  %v998 = vmul.f32 1.0, %v997
  %v999 = vrcp.pop %v907
  %v1000 = vmul.f32 %v907, %v999
  %v1001 = vsub.f32 1.0, %v1000
  %v1002 = vmul.f32 %v999, %v1001
  %v1003 = vadd.f32 %v999, %v1002
  %vm1004 = vweird.f32 %v907
  %vm1005 = vweird.f32 %v999
  %vm1006 = vmor %vm1004, %vm1005
  %v1007 = vsel %vm1006, %v999, %v1003
  %v1008 = vand.u32 2147483647, %v907
  %vm1009 = vcmp.eq.f32.partialorder %v1008, 8.507059e+37
  %v1010 = vand.u32 %v907, 2147483648
  %v1011 = vor.u32 1.1754944e-38, %v1010
  %v1012 = vsel %vm1009, %v1011, %v1007
  %v1013 = vmul.f32 1.0, %v1012
  %v1014 = vrcp.pop %v908
  %v1015 = vmul.f32 %v908, %v1014
  %v1016 = vsub.f32 1.0, %v1015
  %v1017 = vmul.f32 %v1014, %v1016
  %v1018 = vadd.f32 %v1014, %v1017
  %vm1019 = vweird.f32 %v908
  %vm1020 = vweird.f32 %v1014
  %vm1021 = vmor %vm1019, %vm1020
  %v1022 = vsel %vm1021, %v1014, %v1018
  %v1023 = vand.u32 2147483647, %v908
  %vm1024 = vcmp.eq.f32.partialorder %v1023, 8.507059e+37
  %v1025 = vand.u32 %v908, 2147483648
  %v1026 = vor.u32 1.1754944e-38, %v1025
  %v1027 = vsel %vm1024, %v1026, %v1022
  %v1028 = vmul.f32 1.0, %v1027
  %v1029 = vtanh.pop %v830
  %v1030 = vtanh.pop %v833
  %v1031 = vtanh.pop %v836
  %v1032 = vtanh.pop %v839
  %v1033 = vtanh.pop %v842
  %v1034 = vtanh.pop %v845
  %v1035 = vtanh.pop %v848
  %v1036 = vtanh.pop %v851
  %v1037 = vxor.u32 %v854, 2147483648
  %v1038 = vxor.u32 %v857, 2147483648
  %v1039 = vxor.u32 %v860, 2147483648
  %v1040 = vxor.u32 %v863, 2147483648
  %v1041 = vxor.u32 %v866, 2147483648
  %v1042 = vxor.u32 %v869, 2147483648
  %v1043 = vxor.u32 %v872, 2147483648
  %v1044 = vxor.u32 %v875, 2147483648
  %v1045 = vmul.f32 %v1037, 1.442695
  %v1046 = vpow.pop %v1045
  %v1047 = vmul.f32 %v1038, 1.442695
  %v1048 = vpow.pop %v1047
  %v1049 = vmul.f32 %v1039, 1.442695
  %v1050 = vpow.pop %v1049
  %v1051 = vmul.f32 %v1040, 1.442695
  %v1052 = vpow.pop %v1051
  %v1053 = vmul.f32 %v1041, 1.442695
  %v1054 = vpow.pop %v1053
  %v1055 = vmul.f32 %v1042, 1.442695
  %v1056 = vpow.pop %v1055
  %v1057 = vmul.f32 %v1043, 1.442695
  %v1058 = vpow.pop %v1057
  %v1059 = vmul.f32 %v1044, 1.442695
  %v1060 = vpow.pop %v1059
  %v1061 = vadd.f32 %v1046, 1.0
  %v1062 = vadd.f32 %v1048, 1.0
  %v1063 = vadd.f32 %v1050, 1.0
  %v1064 = vadd.f32 %v1052, 1.0
  %v1065 = vadd.f32 %v1054, 1.0
  %v1066 = vadd.f32 %v1056, 1.0
  %v1067 = vadd.f32 %v1058, 1.0
  %v1068 = vadd.f32 %v1060, 1.0
  %v1069 = vrcp.pop %v1061
  %v1070 = vmul.f32 %v1061, %v1069
  %v1071 = vsub.f32 1.0, %v1070
  %v1072 = vmul.f32 %v1069, %v1071
  %v1073 = vadd.f32 %v1069, %v1072
  %vm1074 = vweird.f32 %v1061
  %vm1075 = vweird.f32 %v1069
  %vm1076 = vmor %vm1074, %vm1075
  %v1077 = vsel %vm1076, %v1069, %v1073
  %v1078 = vand.u32 2147483647, %v1061
  %vm1079 = vcmp.eq.f32.partialorder %v1078, 8.507059e+37
  %v1080 = vand.u32 %v1061, 2147483648
  %v1081 = vor.u32 1.1754944e-38, %v1080
  %v1082 = vsel %vm1079, %v1081, %v1077
  %v1083 = vmul.f32 1.0, %v1082
  %v1084 = vrcp.pop %v1062
  %v1085 = vmul.f32 %v1062, %v1084
  %v1086 = vsub.f32 1.0, %v1085
  %v1087 = vmul.f32 %v1084, %v1086
  %v1088 = vadd.f32 %v1084, %v1087
  %vm1089 = vweird.f32 %v1062
  %vm1090 = vweird.f32 %v1084
  %vm1091 = vmor %vm1089, %vm1090
  %v1092 = vsel %vm1091, %v1084, %v1088
  %v1093 = vand.u32 2147483647, %v1062
  %vm1094 = vcmp.eq.f32.partialorder %v1093, 8.507059e+37
  %v1095 = vand.u32 %v1062, 2147483648
  %v1096 = vor.u32 1.1754944e-38, %v1095
  %v1097 = vsel %vm1094, %v1096, %v1092
  %v1098 = vmul.f32 1.0, %v1097
  %v1099 = vrcp.pop %v1063
  %v1100 = vmul.f32 %v1063, %v1099
  %v1101 = vsub.f32 1.0, %v1100
  %v1102 = vmul.f32 %v1099, %v1101
  %v1103 = vadd.f32 %v1099, %v1102
  %vm1104 = vweird.f32 %v1063
  %vm1105 = vweird.f32 %v1099
  %vm1106 = vmor %vm1104, %vm1105
  %v1107 = vsel %vm1106, %v1099, %v1103
  %v1108 = vand.u32 2147483647, %v1063
  %vm1109 = vcmp.eq.f32.partialorder %v1108, 8.507059e+37
  %v1110 = vand.u32 %v1063, 2147483648
  %v1111 = vor.u32 1.1754944e-38, %v1110
  %v1112 = vsel %vm1109, %v1111, %v1107
  %v1113 = vmul.f32 1.0, %v1112
  %v1114 = vrcp.pop %v1064
  %v1115 = vmul.f32 %v1064, %v1114
  %v1116 = vsub.f32 1.0, %v1115
  %v1117 = vmul.f32 %v1114, %v1116
  %v1118 = vadd.f32 %v1114, %v1117
  %vm1119 = vweird.f32 %v1064
  %vm1120 = vweird.f32 %v1114
  %vm1121 = vmor %vm1119, %vm1120
  %v1122 = vsel %vm1121, %v1114, %v1118
  %v1123 = vand.u32 2147483647, %v1064
  %vm1124 = vcmp.eq.f32.partialorder %v1123, 8.507059e+37
  %v1125 = vand.u32 %v1064, 2147483648
  %v1126 = vor.u32 1.1754944e-38, %v1125
  %v1127 = vsel %vm1124, %v1126, %v1122
  %v1128 = vmul.f32 1.0, %v1127
  %v1129 = vrcp.pop %v1065
  %v1130 = vmul.f32 %v1065, %v1129
  %v1131 = vsub.f32 1.0, %v1130
  %v1132 = vmul.f32 %v1129, %v1131
  %v1133 = vadd.f32 %v1129, %v1132
  %vm1134 = vweird.f32 %v1065
  %vm1135 = vweird.f32 %v1129
  %vm1136 = vmor %vm1134, %vm1135
  %v1137 = vsel %vm1136, %v1129, %v1133
  %v1138 = vand.u32 2147483647, %v1065
  %vm1139 = vcmp.eq.f32.partialorder %v1138, 8.507059e+37
  %v1140 = vand.u32 %v1065, 2147483648
  %v1141 = vor.u32 1.1754944e-38, %v1140
  %v1142 = vsel %vm1139, %v1141, %v1137
  %v1143 = vmul.f32 1.0, %v1142
  %v1144 = vrcp.pop %v1066
  %v1145 = vmul.f32 %v1066, %v1144
  %v1146 = vsub.f32 1.0, %v1145
  %v1147 = vmul.f32 %v1144, %v1146
  %v1148 = vadd.f32 %v1144, %v1147
  %vm1149 = vweird.f32 %v1066
  %vm1150 = vweird.f32 %v1144
  %vm1151 = vmor %vm1149, %vm1150
  %v1152 = vsel %vm1151, %v1144, %v1148
  %v1153 = vand.u32 2147483647, %v1066
  %vm1154 = vcmp.eq.f32.partialorder %v1153, 8.507059e+37
  %v1155 = vand.u32 %v1066, 2147483648
  %v1156 = vor.u32 1.1754944e-38, %v1155
  %v1157 = vsel %vm1154, %v1156, %v1152
  %v1158 = vmul.f32 1.0, %v1157
  %v1159 = vrcp.pop %v1067
  %v1160 = vmul.f32 %v1067, %v1159
  %v1161 = vsub.f32 1.0, %v1160
  %v1162 = vmul.f32 %v1159, %v1161
  %v1163 = vadd.f32 %v1159, %v1162
  %vm1164 = vweird.f32 %v1067
  %vm1165 = vweird.f32 %v1159
  %vm1166 = vmor %vm1164, %vm1165
  %v1167 = vsel %vm1166, %v1159, %v1163
  %v1168 = vand.u32 2147483647, %v1067
  %vm1169 = vcmp.eq.f32.partialorder %v1168, 8.507059e+37
  %v1170 = vand.u32 %v1067, 2147483648
  %v1171 = vor.u32 1.1754944e-38, %v1170
  %v1172 = vsel %vm1169, %v1171, %v1167
  %v1173 = vmul.f32 1.0, %v1172
  %v1174 = vrcp.pop %v1068
  %v1175 = vmul.f32 %v1068, %v1174
  %v1176 = vsub.f32 1.0, %v1175
  %v1177 = vmul.f32 %v1174, %v1176
  %v1178 = vadd.f32 %v1174, %v1177
  %vm1179 = vweird.f32 %v1068
  %vm1180 = vweird.f32 %v1174
  %vm1181 = vmor %vm1179, %vm1180
  %v1182 = vsel %vm1181, %v1174, %v1178
  %v1183 = vand.u32 2147483647, %v1068
  %vm1184 = vcmp.eq.f32.partialorder %v1183, 8.507059e+37
  %v1185 = vand.u32 %v1068, 2147483648
  %v1186 = vor.u32 1.1754944e-38, %v1185
  %v1187 = vsel %vm1184, %v1186, %v1182
  %v1188 = vmul.f32 1.0, %v1187
  %v1189 = vmul.f32 %v923, %v1029
  %v1190 = vmul.f32 %v938, %v1030
  %v1191 = vmul.f32 %v953, %v1031
  %v1192 = vmul.f32 %v968, %v1032
  %v1193 = vmul.f32 %v983, %v1033
  %v1194 = vmul.f32 %v998, %v1034
  %v1195 = vmul.f32 %v1013, %v1035
  %v1196 = vmul.f32 %v1028, %v1036
  %v1197 = vtanh.pop %v1189
  %v1198 = vtanh.pop %v1190
  %v1199 = vtanh.pop %v1191
  %v1200 = vtanh.pop %v1192
  %v1201 = vtanh.pop %v1193
  %v1202 = vtanh.pop %v1194
  %v1203 = vtanh.pop %v1195
  %v1204 = vtanh.pop %v1196
  %v1205 = vmul.f32 %v1083, %v1197
  %v1206 = vmul.f32 %v1098, %v1198
  %v1207 = vmul.f32 %v1113, %v1199
  %v1208 = vmul.f32 %v1128, %v1200
  %v1209 = vmul.f32 %v1143, %v1201
  %v1210 = vmul.f32 %v1158, %v1202
  %v1211 = vmul.f32 %v1173, %v1203
  %v1212 = vmul.f32 %v1188, %v1204
  %v1213 = vld [vmem:[%s4] sm:$0xff]
  %v1214 = vld [vmem:[%s4 + $0x8] sm:$0xff]
  %v1215 = vld [vmem:[%s4 + $0x10] sm:$0xff]
  %v1216 = vld [vmem:[%s4 + $0x18] sm:$0xff]
  %v1217 = vld [vmem:[%s4 + $0x20] sm:$0xff]
  %v1218 = vld [vmem:[%s4 + $0x28] sm:$0xff]
  %v1219 = vld [vmem:[%s4 + $0x30] sm:$0xff]
  %v1220 = vld [vmem:[%s4 + $0x38] sm:$0xff]
  %1222 = vset.pattern.permute.xlu0 0
  %1223 = vperm.xlu0 %1222, %v1213
  %v1224 = vpop.permute.xlu0 %1223
  %1227 = vset.pattern.permute.xlu0 0
  %1228 = vperm.xlu0 %1227, %v1214
  %v1229 = vpop.permute.xlu0 %1228
  %1232 = vset.pattern.permute.xlu0 0
  %1233 = vperm.xlu0 %1232, %v1215
  %v1234 = vpop.permute.xlu0 %1233
  %1237 = vset.pattern.permute.xlu0 0
  %1238 = vperm.xlu0 %1237, %v1216
  %v1239 = vpop.permute.xlu0 %1238
  %1242 = vset.pattern.permute.xlu0 0
  %1243 = vperm.xlu0 %1242, %v1217
  %v1244 = vpop.permute.xlu0 %1243
  %1247 = vset.pattern.permute.xlu0 0
  %1248 = vperm.xlu0 %1247, %v1218
  %v1249 = vpop.permute.xlu0 %1248
  %1252 = vset.pattern.permute.xlu0 0
  %1253 = vperm.xlu0 %1252, %v1219
  %v1254 = vpop.permute.xlu0 %1253
  %1257 = vset.pattern.permute.xlu0 0
  %1258 = vperm.xlu0 %1257, %v1220
  %v1259 = vpop.permute.xlu0 %1258
  %v1261 = vmul.f32 %v1205, %v1224
  %v1262 = vmul.f32 %v1206, %v1229
  %v1263 = vmul.f32 %v1207, %v1234
  %v1264 = vmul.f32 %v1208, %v1239
  %v1265 = vmul.f32 %v1209, %v1244
  %v1266 = vmul.f32 %v1210, %v1249
  %v1267 = vmul.f32 %v1211, %v1254
  %v1268 = vmul.f32 %v1212, %v1259
  %v1269 = vadd.f32 %v1261, %v1262
  %v1270 = vadd.f32 %v1269, %v1263
  %v1271 = vadd.f32 %v1270, %v1264
  %v1272 = vadd.f32 %v1271, %v1265
  %v1273 = vadd.f32 %v1272, %v1266
  %v1274 = vadd.f32 %v1273, %v1267
  %v1275 = vadd.f32 %v1274, %v1268
  %v1276 = vrot.slane %v1275, 4
  %v1277 = vadd.f32 %v1275, %v1276
  %v1278 = vrot.slane %v1277, 2
  %v1279 = vadd.f32 %v1277, %v1278
  %v1280 = vrot.slane %v1279, 1
  %v1281 = vadd.f32 %v1279, %v1280
  %s1282 = sld [smem:[#allocation2]]
  %v1283 = vstv %s1282
  %v1284 = vadd.f32 %v1281, %v1283
  %1285 = vst [vmem:[%s6] sm:$0x1] %v1284
  // Predicated region
  $region26: #{lstm_model_forward.1} parent=0 // pred_check
    _
  $region27: #{lstm_model_forward.1} parent=0 // pred_check_branch
    %1287 = sbr.rel (0) target = $region29
  $region28: #{lstm_model_forward.1} parent=0 // pred_region
    _
  $region29: #{lstm_model_forward.1} parent=0 // pred_fallthru
    _
  // Predicated region
  $region30: #{lstm_model_forward.1} parent=0 // pred_check
    _
  $region31: #{lstm_model_forward.1} parent=0 // pred_check_branch
    %1289 = sbr.rel (0) target = $region33
  $region32: #{lstm_model_forward.1} parent=0 // pred_region
    _
  $region33: #{lstm_model_forward.1} parent=0 // pred_fallthru
    _

</llo_original>
